<compile_context>
chip_gen: v5e
topology: v5e:2x2
jax: 0.10.0
libtpu: 0.0.40
codegen_flags: <defaults>
</compile_context>

<pallas_src>
import functools

import jax
import jax.numpy as jnp
from jax import lax
from jax.experimental import pallas as pl
from jax.experimental.pallas import tpu as pltpu


def _graph_learner_kernel(emb_ref, w12_ref, b12_ref, out_ref, *, alpha, hp):
    emb = emb_ref[...]                       # (bt, m, H)  input dtype (f32)
    w12 = w12_ref[...]                       # (H, 2*Hp)   pre-transposed [W1^T | 0 | W2^T | 0]
    b12 = b12_ref[...]                       # (1, 2*Hp)   f32, zero in padded lanes

    bt, m, h = emb.shape
    x = emb.reshape(bt * m, h)               # m is padded to a multiple of 8 -> clean merge

    # bf16 fast path: weights were cast in the wrapper; only the activation
    # block is cast per step.
    if x.dtype != w12.dtype:
        x = x.astype(w12.dtype)

    # Fused projection, single MXU matmul, f32 accumulation.  Padded lanes get
    # exactly 0 (zero weight columns + zero bias), so tanh(0)=0 there.
    pre = lax.dot_general(x, w12, (((1,), (0,)), ((), ())),
                          preferred_element_type=jnp.float32) + b12     # (bt*m, 2Hp)
    if alpha != 1.0:
        pre = alpha * pre
    nodevec = jnp.tanh(pre)                                             # EUP, f32

    # Lane-tile-aligned split (hp is a multiple of 128): no mid-tile lane shift.
    n1 = nodevec[:, :hp].reshape(bt, m, hp)
    n2 = nodevec[:, hp:].reshape(bt, m, hp)

    # Pairwise products stay in f32 (MXU, contraction over last dims, no
    # explicit transpose).  a^T is a second MXU einsum rather than an XLU
    # swapaxes.  Padded columns contribute exactly 0.
    a = jnp.einsum("bik,bjk->bij", n1, n2,
                   preferred_element_type=jnp.float32)                  # (bt, m, m)
    at = jnp.einsum("bik,bjk->bij", n2, n1,
                    preferred_element_type=jnp.float32)
    adj = a - at
    if alpha != 1.0:
        adj = alpha * adj
    out_ref[...] = jnp.maximum(jnp.tanh(adj), 0.0).astype(out_ref.dtype)


def _vmem_budget_bytes():
    """Generation-aware scoped-VMEM budget (conservative fraction of physical)."""
    cap = 128 << 20
    try:
        info = pltpu.get_tpu_info()
        cap = int(getattr(info, "vmem_capacity_bytes", cap) or cap)
    except Exception:
        pass
    # 128 MiB chips (v5e/v6e) -> 96 MiB; 64 MiB chips (v7x per-TC) -> 48 MiB.
    return int(min((cap * 3) // 4, 96 << 20))


def _pick_block_batch(B, m, H, Hp, itemsize, vmem_budget):
    """Largest bt whose pipelined blocks + body temporaries fit the budget,
    soft-capped on block rows and capped to keep >=2 grid steps when B >= 2
    (so v7x's two TensorCores both get work on the 'parallel' batch axis)."""
    # Loop-invariant weight/bias blocks are still double-buffered by the pipeline.
    resident = 2 * (H * 2 * Hp + 2 * Hp) * 4
    budget = max(vmem_budget - resident, 1 << 20)
    per_batch = (2 * m * (H + m) * itemsize          # double-buffered in/out blocks
                 + m * (4 * Hp + 2 * m) * 4)         # f32 body temps: pre+nodevec, a+a^T
    bt = max(1, min(B, budget // max(per_batch, 1)))
    bt = min(bt, max(1, 4096 // max(m, 1)))          # soft cap: <= 4096 block rows
    if B >= 2:
        bt = min(bt, (B + 1) // 2)                   # keep >= 2 parallel steps (dual-TC)
    return int(max(bt, 1))


def graph_learner(embedding, w1, b1, w2, b2, alpha=1.0, *,
                  matmul_dtype=jnp.float32, block_batch=None):
    """embedding: (B, m, H); w1/w2: (H, H) nn.Linear weights (out, in); b1/b2: (H,).

    matmul_dtype=jnp.bfloat16 is a v6e/v7x-only fast path for the projection
    matmul; keep the f32 default on v5e (latency-bound at these shapes, and the
    v5e VPU has no bf16 support).
    """
    B, m, H = embedding.shape
    in_dtype = embedding.dtype

    # Pad m up to a multiple of 8 so the in-kernel (bt, m, H) -> (bt*m, H)
    # reshape never crosses sublane-tile boundaries.
    m_pad = -(-m // 8) * 8
    # Per-projection output width padded to a multiple of 128 so the n1/n2
    # split is lane-tile aligned; 2*Hp = 256 is one native MXU tile on v6e/v7x.
    Hp = max(128, -(-H // 128) * 128)

    # Fused, pre-transposed, lane-padded weight/bias built once in the wrapper.
    w12 = jnp.zeros((H, 2 * Hp), dtype=jnp.float32)
    w12 = w12.at[:, :H].set(w1.T.astype(jnp.float32))
    w12 = w12.at[:, Hp:Hp + H].set(w2.T.astype(jnp.float32))
    mm_dt = jnp.dtype(matmul_dtype)
    if mm_dt != w12.dtype:
        w12 = w12.astype(mm_dt)       # cast once here, not per grid step
    b12 = jnp.zeros((1, 2 * Hp), dtype=jnp.float32)
    b12 = b12.at[0, :H].set(b1.astype(jnp.float32))
    b12 = b12.at[0, Hp:Hp + H].set(b2.astype(jnp.float32))

    vmem_limit = _vmem_budget_bytes()
    if block_batch is not None:
        bt = int(max(1, min(block_batch, B)))
    else:
        bt = _pick_block_batch(B, m_pad, H, Hp, in_dtype.itemsize, vmem_limit)

    # Pad batch so blocks are exact (handles prime/odd B without bt=1 fallback).
    Bp = -(-B // bt) * bt
    emb = embedding
    if m_pad != m:
        emb = jnp.pad(emb, ((0, 0), (0, m_pad - m), (0, 0)))
    if Bp != B:
        emb = jnp.pad(emb, ((0, Bp - B), (0, 0), (0, 0)))

    # Advisory cost hint (this call is tiny and latency-bound; let XLA overlap it).
    flops = (2 * Bp * m_pad * H * (2 * Hp)             # fused projection
             + 2 * 2 * Bp * m_pad * m_pad * Hp)        # a and a^T
    transcendentals = Bp * m_pad * (2 * Hp + m_pad)    # tanh(nodevec) + tanh(adj)
    bytes_accessed = (Bp * m_pad * H * in_dtype.itemsize
                      + w12.size * w12.dtype.itemsize + b12.size * 4
                      + Bp * m_pad * m_pad * in_dtype.itemsize)
    cost = pl.CostEstimate(flops=int(flops), transcendentals=int(transcendentals),
                           bytes_accessed=int(bytes_accessed))

    kernel = functools.partial(_graph_learner_kernel, alpha=float(alpha), hp=Hp)

    out = pl.pallas_call(
        kernel,
        out_shape=jax.ShapeDtypeStruct((Bp, m_pad, m_pad), in_dtype),
        grid_spec=pltpu.PrefetchScalarGridSpec(
            num_scalar_prefetch=0,
            grid=(Bp // bt,),
            in_specs=[
                pl.BlockSpec((bt, m_pad, H), lambda b: (b, 0, 0)),   # bt batches / step
                pl.BlockSpec((H, 2 * Hp), lambda b: (0, 0)),         # fused [W1^T | W2^T]
                pl.BlockSpec((1, 2 * Hp), lambda b: (0, 0)),         # fused [b1 | b2]
            ],
            out_specs=pl.BlockSpec((bt, m_pad, m_pad), lambda b: (b, 0, 0)),
        ),
        compiler_params=pltpu.CompilerParams(
            dimension_semantics=("parallel",),
            vmem_limit_bytes=int(vmem_limit)),
        cost_estimate=cost,
    )(emb, w12, b12)

    if Bp != B or m_pad != m:
        out = out[:B, :m, :m]
    return out


def graph_learner_ref(embedding, w1, b1, w2, b2, alpha=1.0):
    """Pure-JAX reference mirroring the PyTorch GraphLearner.forward."""
    n1 = jnp.tanh(alpha * (embedding @ w1.T + b1))
    n2 = jnp.tanh(alpha * (embedding @ w2.T + b2))
    adj = jnp.einsum("bik,bjk->bij", n1, n2) - jnp.einsum("bik,bjk->bij", n2, n1)
    return jnp.maximum(jnp.tanh(alpha * adj), 0.0)


if __name__ == "__main__":
    B, m, H = 4, 16, 40          # hidR = 40 as in the EpiGNN defaults

    key = jax.random.PRNGKey(0)
    k_emb, k_w1, k_b1, k_w2, k_b2 = jax.random.split(key, 5)

    embedding = jax.random.normal(k_emb, (B, m, H), dtype=jnp.float32)
    # nn.Linear default init scale: U(-1/sqrt(H), 1/sqrt(H)); deterministic via PRNGKey.
    bound = 1.0 / (H ** 0.5)
    w1 = jax.random.uniform(k_w1, (H, H), jnp.float32, -bound, bound)
    b1 = jax.random.uniform(k_b1, (H,), jnp.float32, -bound, bound)
    w2 = jax.random.uniform(k_w2, (H, H), jnp.float32, -bound, bound)
    b2 = jax.random.uniform(k_b2, (H,), jnp.float32, -bound, bound)

    # 1) f32 MXU path, alpha == 1.0 (model default) — exact match to reference.
    out = jax.block_until_ready(graph_learner(embedding, w1, b1, w2, b2, alpha=1.0))
    ref = graph_learner_ref(embedding, w1, b1, w2, b2, alpha=1.0)
    assert out.shape == (B, m, m)
    assert jnp.allclose(out, ref, atol=1e-5, rtol=1e-5), "f32 path mismatch vs reference"

    # 2) alpha != 1.0 exercises the scaling branch.
    out_a = jax.block_until_ready(graph_learner(embedding, w1, b1, w2, b2, alpha=1.5))
    ref_a = graph_learner_ref(embedding, w1, b1, w2, b2, alpha=1.5)
    assert jnp.allclose(out_a, ref_a, atol=1e-5, rtol=1e-5), "alpha path mismatch"

    # 3) odd batch (exercises batch padding / non-divisor handling).
    out_odd = jax.block_until_ready(
        graph_learner(embedding[:3], w1, b1, w2, b2, alpha=1.0))
    assert jnp.allclose(out_odd, ref[:3], atol=1e-5, rtol=1e-5), "odd-B path mismatch"

    # 4) bf16 projection (v6e/v7x fast path; pairwise products stay f32) — looser tol.
    out_bf = jax.block_until_ready(
        graph_learner(embedding, w1, b1, w2, b2, alpha=1.0, matmul_dtype=jnp.bfloat16))
    assert jnp.allclose(out_bf, ref, atol=1e-1, rtol=1e-1), "bf16 path mismatch"

    print("KERNEL_OK")
</pallas_src>

<mosaic_0001>
module attributes {stable_mosaic.version = 11 : i64} {
  func.func @_graph_learner_kernel(%arg0: i32, %arg1: memref<2x16x40xf32, #tpu.memory_space<vmem>>, %arg2: memref<40x256xf32, #tpu.memory_space<vmem>>, %arg3: memref<1x256xf32, #tpu.memory_space<vmem>>, %arg4: memref<2x16x16xf32, #tpu.memory_space<vmem>>) attributes {dimension_semantics = [#tpu.dimension_semantics<parallel>], iteration_bounds = array<i64: 2>, scalar_prefetch = 0 : i64, scratch_operands = 0 : i64, tpu.core_type = #tpu.core_type<tc>, window_params = [{transform_indices = @transform_0, window_bounds = array<i64: 2, 16, 40>}, {pipeline_mode = #tpu.pipeline_mode<synchronous>, transform_indices = @transform_1, window_bounds = array<i64: 40, 256>}, {pipeline_mode = #tpu.pipeline_mode<synchronous>, transform_indices = @transform_2, window_bounds = array<i64: 1, 256>}, {transform_indices = @transform_3, window_bounds = array<i64: 2, 16, 16>}]} {
    %c0 = arith.constant 0 : index
    %c0_0 = arith.constant 0 : index
    %c0_1 = arith.constant 0 : index
    %0 = vector.load %arg1[%c0, %c0_0, %c0_1] : memref<2x16x40xf32, #tpu.memory_space<vmem>>, vector<2x16x40xf32>
    %c0_2 = arith.constant 0 : index
    %c0_3 = arith.constant 0 : index
    %1 = vector.load %arg2[%c0_2, %c0_3] : memref<40x256xf32, #tpu.memory_space<vmem>>, vector<40x256xf32>
    %c0_4 = arith.constant 0 : index
    %c0_5 = arith.constant 0 : index
    %2 = vector.load %arg3[%c0_4, %c0_5] : memref<1x256xf32, #tpu.memory_space<vmem>>, vector<1x256xf32>
    %3 = vector.shape_cast %0 : vector<2x16x40xf32> to vector<32x40xf32>
    %cst = arith.constant dense<0.000000e+00> : vector<32x256xf32>
    %4 = tpu.matmul %3, %1, %cst {dimension_numbers = #tpu.dot_dimension_numbers<[1], [0], [0], [1], [0, 0, 1, 1], [], []>} : vector<32x40xf32>, vector<40x256xf32>, vector<32x256xf32> -> vector<32x256xf32>
    %5 = vector.broadcast %2 : vector<1x256xf32> to vector<32x256xf32>
    %6 = arith.addf %4, %5 : vector<32x256xf32>
    %7 = math.tanh %6 : vector<32x256xf32>
    %8 = vector.extract_strided_slice %7 {offsets = [0, 0], sizes = [32, 128], strides = [1, 1]} : vector<32x256xf32> to vector<32x128xf32>
    %9 = vector.shape_cast %8 : vector<32x128xf32> to vector<2x16x128xf32>
    %10 = vector.extract_strided_slice %7 {offsets = [0, 128], sizes = [32, 128], strides = [1, 1]} : vector<32x256xf32> to vector<32x128xf32>
    %11 = vector.shape_cast %10 : vector<32x128xf32> to vector<2x16x128xf32>
    "tpu.trace_start"() <{level = 10 : i32, message = "bik,bjk->bij"}> : () -> ()
    %cst_6 = arith.constant dense<0.000000e+00> : vector<2x16x16xf32>
    %12 = tpu.matmul %9, %11, %cst_6 {dimension_numbers = #tpu.dot_dimension_numbers<[2], [2], [1], [1], [0, 0, 0, 1, 1, 1], [0], [0]>} : vector<2x16x128xf32>, vector<2x16x128xf32>, vector<2x16x16xf32> -> vector<2x16x16xf32>
    %cst_7 = arith.constant dense<0.000000e+00> : vector<2x16x16xf32>
    %13 = tpu.matmul %11, %9, %cst_7 {dimension_numbers = #tpu.dot_dimension_numbers<[2], [2], [1], [1], [0, 0, 0, 1, 1, 1], [0], [0]>} : vector<2x16x128xf32>, vector<2x16x128xf32>, vector<2x16x16xf32> -> vector<2x16x16xf32>
    "tpu.trace_stop"() : () -> ()
    %14 = arith.subf %12, %13 : vector<2x16x16xf32>
    %15 = math.tanh %14 : vector<2x16x16xf32>
    %cst_8 = arith.constant 0.000000e+00 : f32
    %16 = vector.broadcast %cst_8 : f32 to vector<2x16x16xf32>
    %17 = arith.maximumf %15, %16 : vector<2x16x16xf32>
    %c0_9 = arith.constant 0 : index
    %c0_10 = arith.constant 0 : index
    %c0_11 = arith.constant 0 : index
    %18 = vector.load %arg4[%c0_9, %c0_10, %c0_11] : memref<2x16x16xf32, #tpu.memory_space<vmem>>, vector<2x16x16xf32>
    tpu.vector_store %arg4[%c0_9, %c0_10, %c0_11], %17 {strides = array<i32>} : memref<2x16x16xf32, #tpu.memory_space<vmem>>, vector<2x16x16xf32>,
    return
  }
  func.func @transform_0(%arg0: i32) -> (i32, i32, i32) {
    %c0_i32 = arith.constant 0 : i32
    %c0_i32_0 = arith.constant 0 : i32
    %c0_i32_1 = arith.constant 0 : i32
    return %arg0, %c0_i32, %c0_i32_0 : i32, i32, i32
  }
  func.func @transform_1(%arg0: i32) -> (i32, i32) {
    %c0_i32 = arith.constant 0 : i32
    %c0_i32_0 = arith.constant 0 : i32
    %c0_i32_1 = arith.constant 0 : i32
    return %c0_i32, %c0_i32_0 : i32, i32
  }
  func.func @transform_2(%arg0: i32) -> (i32, i32) {
    %c0_i32 = arith.constant 0 : i32
    %c0_i32_0 = arith.constant 0 : i32
    %c0_i32_1 = arith.constant 0 : i32
    return %c0_i32, %c0_i32_0 : i32, i32
  }
  func.func @transform_3(%arg0: i32) -> (i32, i32, i32) {
    %c0_i32 = arith.constant 0 : i32
    %c0_i32_0 = arith.constant 0 : i32
    %c0_i32_1 = arith.constant 0 : i32
    return %arg0, %c0_i32, %c0_i32_0 : i32, i32, i32
  }
}

</mosaic_0001>

<llo_original>
// kernel: tpu_custom_call.1
$region0: #{tpu_custom_call.1}
  #allocation0 [shape = 'u32[]', space=smem, size = 0x4, offset = 0x4, fixed_abs, tag = 'smem constant byte address 0x4 - core index']
  #allocation1 [shape = 'u32[72,128]{1,0:T(1,128)}', space=vmem, size = 0x9000, scoped, tag = 'internal scratch']
  %s0 = inlined_call_operand.hbm [shape: f32[4,16,40], index: 0, kind: input, shape index: {}]
  %s1 = inlined_call_operand.hbm [shape: f32[40,256], index: 1, kind: input, shape index: {}]
  %s2 = inlined_call_operand.hbm [shape: f32[1,256], index: 2, kind: input, shape index: {}]
  %s3 = inlined_call_operand.hbm [shape: f32[4,16,16], index: 3, kind: output, shape index: {}]
  %s4 = sld [smem:[#allocation0]]
  $region57: #{tpu_custom_call.1} parent=0
    _
  %s6 = ssub.s32 1, %s4
  %s7 = scalar_select 0, %s6, %s4
  $region1: #{tpu_custom_call.1} parent=0
    #allocation2 [shape = 'u8[32768]{0}', space=vmem, size = 0x8000, scoped, tag = 'input window, operand 0']
    #allocation3 [shape = 's32[2]{0}', space=sflag, size = 0x8, scoped, tag = 'scoped memory for tpu_custom_call.1']
    #allocation4 [shape = 's32[2]{0}', space=sflag, size = 0x8, scoped, tag = 'scoped memory for tpu_custom_call.1']
    #allocation5 [shape = 'u8[40960]{0}', space=vmem, size = 0xa000, scoped, tag = 'input window, operand 1, single buffered']
    #allocation6 [shape = 's32[1]{0}', space=sflag, size = 0x4, scoped, tag = 'scoped memory for tpu_custom_call.1']
    #allocation7 [shape = 'u8[1024]{0}', space=vmem, size = 0x400, scoped, tag = 'input window, operand 2, single buffered']
    #allocation8 [shape = 'u8[32768]{0}', space=vmem, size = 0x8000, scoped, tag = 'output window, operand 0']
    %8 = vsyncpa [#allocation3], 0
    %s9 = scalar_lea.sflag [#allocation3], 1
    %10 = vsyncpa %s9, 0
    %11 = vsyncpa [#allocation6], 0
    %12 = vsyncpa [#allocation4], 0
    %s13 = scalar_lea.sflag [#allocation4], 1
    %14 = vsyncpa %s13, 0
    loop: start=0, step=1, limit=4
    $region2: #{tpu_custom_call.1} parent=1 // loop_pre_header
      _
    $region3: #{tpu_custom_call.1} parent=1 // loop_header
      %s16 = sphi 0, %s20
      %p17 = scmp.ge.s32.totalorder %s16, 4
      %s26 = sphi 0, %s28
      %s29 = sphi 0, %s26
      %s30 = sphi 0, %s29
      %s46 = sphi 0, %s30
      %s50 = sphi 0, %s50
      %s52 = sphi 0, %s50
      %s53 = sphi 0, %s52
      %s67 = sphi 0, %s53
      %s71 = sphi 0, %s71
      %s73 = sphi 0, %s71
      %s74 = sphi 0, %s73
      %s88 = sphi 0, %s74
      %s94 = sphi 0, %s96
      %s97 = sphi 0, %s94
      %s98 = sphi 0, %s97
      %s114 = sphi 0, %s98
    $region4: #{tpu_custom_call.1} parent=1 // loop_header_branch
      %19 = sbr.rel (%p17) target = $region8
    $region5: #{tpu_custom_call.1} parent=1 // loop_body
      %s21 = ssub.s32 %s16, 1
      %s22 = ssub.s32 %s16, 2
      %s23 = sadd.s32 %s16, 1
      %s24 = ssub.s32 %s16, %s23
      %p25 = scmp.eq.s32.totalorder %s24, 0
      %s27 = sadd.s32 %s26, 1
      %s28 = scalar_select %p25, %s26, %s27
      %p31 = pneg %p25
      %p32 = scmp.eq.s32.totalorder %s16, 1
      %p33 = por %p31, %p32
      %p34 = scmp.ne.s32.totalorder %s26, %s29
      %p35 = scmp.eq.s32.totalorder %s16, 0
      %p36 = por %p34, %p35
      %p37 = scmp.ne.s32.totalorder %s26, %s29
      %p38 = scmp.eq.s32.totalorder %s21, 1
      %p39 = por %p37, %p38
      %p40 = scmp.ne.s32.totalorder %s29, %s30
      %p41 = scmp.eq.s32.totalorder %s21, 0
      %p42 = por %p40, %p41
      %p43 = scmp.ne.s32.totalorder %s29, %s30
      %p44 = scmp.eq.s32.totalorder %s22, 1
      %p45 = por %p43, %p44
      %p47 = scmp.ne.s32.totalorder %s30, %s46
      %p48 = scmp.eq.s32.totalorder %s22, 0
      %p49 = por %p47, %p48
      %s51 = sadd.s32 %s50, 1
      %p54 = scmp.eq.s32.totalorder %s16, 1
      %p55 = scmp.ne.s32.totalorder %s50, %s52
      %p56 = scmp.eq.s32.totalorder %s16, 0
      %p57 = por %p55, %p56
      %p58 = scmp.ne.s32.totalorder %s50, %s52
      %p59 = scmp.eq.s32.totalorder %s21, 1
      %p60 = por %p58, %p59
      %p61 = scmp.ne.s32.totalorder %s52, %s53
      %p62 = scmp.eq.s32.totalorder %s21, 0
      %p63 = por %p61, %p62
      %p64 = scmp.ne.s32.totalorder %s52, %s53
      %p65 = scmp.eq.s32.totalorder %s22, 1
      %p66 = por %p64, %p65
      %p68 = scmp.ne.s32.totalorder %s53, %s67
      %p69 = scmp.eq.s32.totalorder %s22, 0
      %p70 = por %p68, %p69
      %s72 = sadd.s32 %s71, 1
      %p75 = scmp.eq.s32.totalorder %s16, 1
      %p76 = scmp.ne.s32.totalorder %s71, %s73
      %p77 = scmp.eq.s32.totalorder %s16, 0
      %p78 = por %p76, %p77
      %p79 = scmp.ne.s32.totalorder %s71, %s73
      %p80 = scmp.eq.s32.totalorder %s21, 1
      %p81 = por %p79, %p80
      %p82 = scmp.ne.s32.totalorder %s73, %s74
      %p83 = scmp.eq.s32.totalorder %s21, 0
      %p84 = por %p82, %p83
      %p85 = scmp.ne.s32.totalorder %s73, %s74
      %p86 = scmp.eq.s32.totalorder %s22, 1
      %p87 = por %p85, %p86
      %p89 = scmp.ne.s32.totalorder %s74, %s88
      %p90 = scmp.eq.s32.totalorder %s22, 0
      %p91 = por %p89, %p90
      %s92 = ssub.s32 %s16, %s23
      %p93 = scmp.eq.s32.totalorder %s92, 0
      %s95 = sadd.s32 %s94, 1
      %s96 = scalar_select %p93, %s94, %s95
      %p99 = pneg %p93
      %p100 = scmp.eq.s32.totalorder %s16, 1
      %p101 = por %p99, %p100
      %p102 = scmp.ne.s32.totalorder %s94, %s97
      %p103 = scmp.eq.s32.totalorder %s16, 0
      %p104 = por %p102, %p103
      %p105 = scmp.ne.s32.totalorder %s94, %s97
      %p106 = scmp.eq.s32.totalorder %s21, 1
      %p107 = por %p105, %p106
      %p108 = scmp.ne.s32.totalorder %s97, %s98
      %p109 = scmp.eq.s32.totalorder %s21, 0
      %p110 = por %p108, %p109
      %p111 = scmp.ne.s32.totalorder %s97, %s98
      %p112 = scmp.eq.s32.totalorder %s22, 1
      %p113 = por %p111, %p112
      %p115 = scmp.ne.s32.totalorder %s98, %s114
      %p116 = scmp.eq.s32.totalorder %s22, 0
      %p117 = por %p115, %p116
      %p118 = scmp.le.s32.totalorder 1, %s16
      %p119 = scmp.lt.s32.totalorder %s16, 3
      %p120 = pnand %p118, %p119
      %p121 = pneg %p120
      // Predicated region
      $region9: #{tpu_custom_call.1} parent=5 // pred_check
        _
      $region10: #{tpu_custom_call.1} parent=5 // pred_check_branch
        %123 = sbr.rel (%p120) target = $region12
      $region11: #{tpu_custom_call.1} parent=5 // pred_region
        %s124 = ssub.s32 %s16, 1
        // Predicated region
        $region13: #{tpu_custom_call.1} parent=11 // pred_check
          %p125 = pneg %p63
        $region14: #{tpu_custom_call.1} parent=11 // pred_check_branch
          %127 = sbr.rel (%p125) target = $region16
        $region15: #{tpu_custom_call.1} parent=11 // pred_region
          %129 = vsyncadd [#allocation6], 0
          %s130 = sshll.u32 %s1, 4
          %s131 = int_to_ptr.hbm [resolvable:$true] %s130
          %s132 = sshll.u32 [#allocation5], 4
          %s133 = int_to_ptr.vmem [resolvable:$true] %s132
          %138 = dma.hbm_to_vmem [thread:$0]  %s131, 1280, %s133, [#allocation6], 256, 256, 16
        $region16: #{tpu_custom_call.1} parent=11 // pred_fallthru
          _
        // Predicated region
        $region17: #{tpu_custom_call.1} parent=11 // pred_check
          %p139 = pneg %p84
        $region18: #{tpu_custom_call.1} parent=11 // pred_check_branch
          %141 = sbr.rel (%p139) target = $region20
        $region19: #{tpu_custom_call.1} parent=11 // pred_region
          %143 = vsyncadd [#allocation6], 0
          %s145 = sshll.u32 %s2, 4
          %s146 = int_to_ptr.hbm [resolvable:$true] %s145
          %s147 = sshll.u32 [#allocation7], 4
          %s148 = int_to_ptr.vmem [resolvable:$true] %s147
          %150 = dma.hbm_to_vmem [thread:$0]  %s146, 32, %s148, [#allocation6]
        $region20: #{tpu_custom_call.1} parent=11 // pred_fallthru
          _
      $region12: #{tpu_custom_call.1} parent=5 // pred_fallthru
        _
      %p151 = scmp.lt.s32.totalorder %s16, 2
      // Predicated region
      $region21: #{tpu_custom_call.1} parent=5 // pred_check
        %p152 = pneg %p151
      $region22: #{tpu_custom_call.1} parent=5 // pred_check_branch
        %154 = sbr.rel (%p152) target = $region24
      $region23: #{tpu_custom_call.1} parent=5 // pred_region
        // Predicated region
        $region25: #{tpu_custom_call.1} parent=23 // pred_check
          %p155 = pneg %p36
        $region26: #{tpu_custom_call.1} parent=23 // pred_check_branch
          %157 = sbr.rel (%p155) target = $region28
        $region27: #{tpu_custom_call.1} parent=23 // pred_region
          %s158 = sand.u32 %s26, 1
          %s159 = scalar_lea.sflag [#allocation3], %s158
          %s160 = sand.u32 %s26, 1
          %s161 = smul.addr %s160, 32
          %s162 = scalar_lea.vmem [#allocation2], %s161
          %s163 = smul.u32 2, %s16
          %165 = vsyncadd %s159, 0
          %s166 = smul.addr %s163, 2
          %s167 = smul.addr %s166, 8
          %s168 = scalar_lea.hbm %s0, %s167
          %s169 = sshll.u32 %s168, 4
          %s170 = int_to_ptr.hbm [resolvable:$true] %s169
          %s171 = sshll.u32 %s162, 4
          %s172 = int_to_ptr.vmem [resolvable:$true] %s171
          %177 = dma.hbm_to_vmem [thread:$0]  %s170, 512, %s172, %s159, 128, 128, 8
        $region28: #{tpu_custom_call.1} parent=23 // pred_fallthru
          _
      $region24: #{tpu_custom_call.1} parent=5 // pred_fallthru
        _
      %p178 = scmp.le.s32.totalorder 1, %s16
      %p179 = scmp.lt.s32.totalorder %s16, 3
      %p180 = pnand %p178, %p179
      %p181 = pneg %p180
      // Predicated region
      $region29: #{tpu_custom_call.1} parent=5 // pred_check
        _
      $region30: #{tpu_custom_call.1} parent=5 // pred_check_branch
        %183 = sbr.rel (%p180) target = $region32
      $region31: #{tpu_custom_call.1} parent=5 // pred_region
        %s184 = ssub.s32 %s16, 1
        %s185 = sand.u32 %s29, 1
        %s186 = scalar_lea.sflag [#allocation3], %s185
        %s187 = sand.u32 %s29, 1
        %s188 = smul.addr %s187, 32
        %s189 = scalar_lea.vmem [#allocation2], %s188
        // Predicated region
        $region33: #{tpu_custom_call.1} parent=31 // pred_check
          %p190 = pneg %p42
        $region34: #{tpu_custom_call.1} parent=31 // pred_check_branch
          %192 = sbr.rel (%p190) target = $region36
        $region35: #{tpu_custom_call.1} parent=31 // pred_region
          %194 = dma.done %s186, 512
        $region36: #{tpu_custom_call.1} parent=31 // pred_fallthru
          _
        // Predicated region
        $region37: #{tpu_custom_call.1} parent=31 // pred_check
          %p195 = pneg %p63
        $region38: #{tpu_custom_call.1} parent=31 // pred_check_branch
          %197 = sbr.rel (%p195) target = $region40
        $region39: #{tpu_custom_call.1} parent=31 // pred_region
          %199 = dma.done [#allocation6], 1280
        $region40: #{tpu_custom_call.1} parent=31 // pred_fallthru
          _
        // Predicated region
        $region41: #{tpu_custom_call.1} parent=31 // pred_check
          %p200 = pneg %p84
        $region42: #{tpu_custom_call.1} parent=31 // pred_check_branch
          %202 = sbr.rel (%p200) target = $region44
        $region43: #{tpu_custom_call.1} parent=31 // pred_region
          %204 = dma.done [#allocation6], 32
        $region44: #{tpu_custom_call.1} parent=31 // pred_fallthru
          _
        %s205 = sand.u32 %s29, 1
        %s206 = scalar_lea.sflag [#allocation3], %s205
        %s207 = sand.u32 %s29, 1
        %s208 = smul.addr %s207, 32
        %s209 = scalar_lea.vmem [#allocation2], %s208
        %p210 = pneg %p42
        %p211 = pneg %p39
        %p212 = pneg %p63
        %p213 = pneg %p60
        %p214 = pneg %p84
        %p215 = pneg %p81
        %p216 = pneg %p110
        %p217 = pneg %p107
        %s218 = sand.u32 %s97, 1
        %s219 = scalar_lea.sflag [#allocation4], %s218
        %s220 = sand.u32 %s97, 1
        %s221 = smul.addr %s220, 32
        %s222 = scalar_lea.vmem [#allocation8], %s221
        %s223 = smul.u32 2, %s21
        %s224 = smul.u32 2, %s21
        %v225 = vld [vmem:[%s189] sm:$0xff]
        %v226 = vld [vmem:[%s189 + $0x8] sm:$0xff]
        %v227 = vld [vmem:[%s189 + $0x10] sm:$0xff]
        %v228 = vld [vmem:[%s189 + $0x18] sm:$0xff]
        %v229 = vld [vmem:[#allocation5] sm:$0xff]
        %v230 = vld [vmem:[#allocation5 + $0x8] sm:$0xff]
        %v231 = vld [vmem:[#allocation5 + $0x10] sm:$0xff]
        %v232 = vld [vmem:[#allocation5 + $0x18] sm:$0xff]
        %v233 = vld [vmem:[#allocation5 + $0x20] sm:$0xff]
        %v234 = vld [vmem:[#allocation5 + $0x28] sm:$0xff]
        %v235 = vld [vmem:[#allocation5 + $0x30] sm:$0xff]
        %v236 = vld [vmem:[#allocation5 + $0x38] sm:$0xff]
        %v237 = vld [vmem:[#allocation5 + $0x40] sm:$0xff]
        %v238 = vld [vmem:[#allocation5 + $0x48] sm:$0xff]
        %v239 = vld [vmem:[#allocation7] sm:$0x3]
        %v241 = vperm.slane %v239, 0
        %v242 = vperm.slane %v239, 1
        %vm245 = vcmask 326656
        %v247 = vsel %vm245, %v225, 0
        %v250 = vsel %vm245, %v226, 0
        %v253 = vsel %vm245, %v227, 0
        %v256 = vsel %vm245, %v228, 0
        %258 = vmatpush.msra.mxu0 0.0
        %259 = vmatpush.msra.mxu0 0.0
        %260 = vmatpush.msra.mxu0 0.0
        %261 = vmatpush.msra.mxu0 0.0
        %262 = vmatpush.msra.mxu0 0.0
        %263 = vmatpush.msra.mxu0 0.0
        %264 = vmatpush.msra.mxu0 0.0
        %265 = vmatpush.msra.mxu0 0.0
        %266 = vmatpush.msra.mxu0 0.0
        %267 = vmatpush.msra.mxu0 0.0
        %268 = vmatpush.msra.mxu0 0.0
        %269 = vmatpush.msra.mxu0 %v237
        %270 = vmatpush.msra.mxu0 %v235
        %271 = vmatpush.msra.mxu0 %v233
        %272 = vmatpush.msra.mxu0 %v231
        %273 = vmatpush.msra.mxu0 %v229
        %274 = vmatmul.f32.gmra.mxu0 %v247
        %v275 = vpop.f32.mrf.mxu0
        %v276 = vadd.f32 %v241, %v275
        %277 = vmatmul.f32.gmra.mxu0 %v250
        %v278 = vpop.f32.mrf.mxu0
        %v279 = vadd.f32 %v241, %v278
        %280 = vmatmul.f32.gmra.mxu0 %v253
        %v281 = vpop.f32.mrf.mxu0
        %v282 = vadd.f32 %v241, %v281
        %283 = vmatmul.f32.gmra.mxu0 %v256
        %v284 = vpop.f32.mrf.mxu0
        %v285 = vadd.f32 %v241, %v284
        %286 = vdwg.mxu0
        %287 = vmatpush.msra.mxu0 0.0
        %288 = vmatpush.msra.mxu0 0.0
        %289 = vmatpush.msra.mxu0 0.0
        %290 = vmatpush.msra.mxu0 0.0
        %291 = vmatpush.msra.mxu0 0.0
        %292 = vmatpush.msra.mxu0 0.0
        %293 = vmatpush.msra.mxu0 0.0
        %294 = vmatpush.msra.mxu0 0.0
        %295 = vmatpush.msra.mxu0 0.0
        %296 = vmatpush.msra.mxu0 0.0
        %297 = vmatpush.msra.mxu0 0.0
        %298 = vmatpush.msra.mxu0 %v238
        %299 = vmatpush.msra.mxu0 %v236
        %300 = vmatpush.msra.mxu0 %v234
        %301 = vmatpush.msra.mxu0 %v232
        %302 = vmatpush.msra.mxu0 %v230
        %303 = vmatmul.f32.gmra.mxu0 %v247
        %v304 = vpop.f32.mrf.mxu0
        %v305 = vadd.f32 %v242, %v304
        %306 = vmatmul.f32.gmra.mxu0 %v250
        %v307 = vpop.f32.mrf.mxu0
        %v308 = vadd.f32 %v242, %v307
        %309 = vmatmul.f32.gmra.mxu0 %v253
        %v310 = vpop.f32.mrf.mxu0
        %v311 = vadd.f32 %v242, %v310
        %312 = vmatmul.f32.gmra.mxu0 %v256
        %v313 = vpop.f32.mrf.mxu0
        %v314 = vadd.f32 %v242, %v313
        %315 = vdwg.mxu0
        %v316 = vtanh.pop %v276
        %v317 = vtanh.pop %v305
        %v318 = vtanh.pop %v279
        %v319 = vtanh.pop %v308
        %v320 = vtanh.pop %v282
        %v321 = vtanh.pop %v311
        %v322 = vtanh.pop %v285
        %v323 = vtanh.pop %v314
        %324 = vmatpush.xpose.msra.mxu0 0.0
        %325 = vmatpush.xpose.msra.mxu0 0.0
        %326 = vmatpush.xpose.msra.mxu0 0.0
        %327 = vmatpush.xpose.msra.mxu0 0.0
        %328 = vmatpush.xpose.msra.mxu0 0.0
        %329 = vmatpush.xpose.msra.mxu0 0.0
        %330 = vmatpush.xpose.msra.mxu0 0.0
        %331 = vmatpush.xpose.msra.mxu0 0.0
        %332 = vmatpush.xpose.msra.mxu0 0.0
        %333 = vmatpush.xpose.msra.mxu0 0.0
        %334 = vmatpush.xpose.msra.mxu0 0.0
        %335 = vmatpush.xpose.msra.mxu0 0.0
        %336 = vmatpush.xpose.msra.mxu0 0.0
        %337 = vmatpush.xpose.msra.mxu0 0.0
        %338 = vmatpush.xpose.msra.mxu0 %v319
        %339 = vmatpush.xpose.msra.mxu0 %v317
        %340 = vmatmul.f32.gmra.mxu0 %v316
        %v341 = vpop.f32.mrf.mxu0
        %v342 = vadd.f32 0.0, %v341
        %343 = vmatmul.f32.gmra.mxu0 %v318
        %v344 = vpop.f32.mrf.mxu0
        %v345 = vadd.f32 0.0, %v344
        %346 = vdwg.mxu0
        %347 = vmatpush.xpose.msra.mxu0 0.0
        %348 = vmatpush.xpose.msra.mxu0 0.0
        %349 = vmatpush.xpose.msra.mxu0 0.0
        %350 = vmatpush.xpose.msra.mxu0 0.0
        %351 = vmatpush.xpose.msra.mxu0 0.0
        %352 = vmatpush.xpose.msra.mxu0 0.0
        %353 = vmatpush.xpose.msra.mxu0 0.0
        %354 = vmatpush.xpose.msra.mxu0 0.0
        %355 = vmatpush.xpose.msra.mxu0 0.0
        %356 = vmatpush.xpose.msra.mxu0 0.0
        %357 = vmatpush.xpose.msra.mxu0 0.0
        %358 = vmatpush.xpose.msra.mxu0 0.0
        %359 = vmatpush.xpose.msra.mxu0 0.0
        %360 = vmatpush.xpose.msra.mxu0 0.0
        %361 = vmatpush.xpose.msra.mxu0 %v323
        %362 = vmatpush.xpose.msra.mxu0 %v321
        %363 = vmatmul.f32.gmra.mxu0 %v320
        %v364 = vpop.f32.mrf.mxu0
        %v365 = vadd.f32 0.0, %v364
        %366 = vmatmul.f32.gmra.mxu0 %v322
        %v367 = vpop.f32.mrf.mxu0
        %v368 = vadd.f32 0.0, %v367
        %369 = vdwg.mxu0
        %370 = vmatpush.xpose.msra.mxu0 0.0
        %371 = vmatpush.xpose.msra.mxu0 0.0
        %372 = vmatpush.xpose.msra.mxu0 0.0
        %373 = vmatpush.xpose.msra.mxu0 0.0
        %374 = vmatpush.xpose.msra.mxu0 0.0
        %375 = vmatpush.xpose.msra.mxu0 0.0
        %376 = vmatpush.xpose.msra.mxu0 0.0
        %377 = vmatpush.xpose.msra.mxu0 0.0
        %378 = vmatpush.xpose.msra.mxu0 0.0
        %379 = vmatpush.xpose.msra.mxu0 0.0
        %380 = vmatpush.xpose.msra.mxu0 0.0
        %381 = vmatpush.xpose.msra.mxu0 0.0
        %382 = vmatpush.xpose.msra.mxu0 0.0
        %383 = vmatpush.xpose.msra.mxu0 0.0
        %384 = vmatpush.xpose.msra.mxu0 %v318
        %385 = vmatpush.xpose.msra.mxu0 %v316
        %386 = vmatmul.f32.gmra.mxu0 %v317
        %v387 = vpop.f32.mrf.mxu0
        %v388 = vadd.f32 0.0, %v387
        %389 = vmatmul.f32.gmra.mxu0 %v319
        %v390 = vpop.f32.mrf.mxu0
        %v391 = vadd.f32 0.0, %v390
        %392 = vdwg.mxu0
        %393 = vmatpush.xpose.msra.mxu0 0.0
        %394 = vmatpush.xpose.msra.mxu0 0.0
        %395 = vmatpush.xpose.msra.mxu0 0.0
        %396 = vmatpush.xpose.msra.mxu0 0.0
        %397 = vmatpush.xpose.msra.mxu0 0.0
        %398 = vmatpush.xpose.msra.mxu0 0.0
        %399 = vmatpush.xpose.msra.mxu0 0.0
        %400 = vmatpush.xpose.msra.mxu0 0.0
        %401 = vmatpush.xpose.msra.mxu0 0.0
        %402 = vmatpush.xpose.msra.mxu0 0.0
        %403 = vmatpush.xpose.msra.mxu0 0.0
        %404 = vmatpush.xpose.msra.mxu0 0.0
        %405 = vmatpush.xpose.msra.mxu0 0.0
        %406 = vmatpush.xpose.msra.mxu0 0.0
        %407 = vmatpush.xpose.msra.mxu0 %v322
        %408 = vmatpush.xpose.msra.mxu0 %v320
        %409 = vmatmul.f32.gmra.mxu0 %v321
        %v410 = vpop.f32.mrf.mxu0
        %v411 = vadd.f32 0.0, %v410
        %412 = vmatmul.f32.gmra.mxu0 %v323
        %v413 = vpop.f32.mrf.mxu0
        %v414 = vadd.f32 0.0, %v413
        %415 = vdwg.mxu0
        %v416 = vsub.f32 %v342, %v388
        %v417 = vsub.f32 %v345, %v391
        %v418 = vsub.f32 %v365, %v411
        %v419 = vsub.f32 %v368, %v414
        %v420 = vtanh.pop %v416
        %v421 = vtanh.pop %v417
        %v422 = vtanh.pop %v418
        %v423 = vtanh.pop %v419
        %v424 = vmax.f32 %v420, 0.0
        %v425 = vmax.f32 %v421, 0.0
        %v426 = vmax.f32 %v422, 0.0
        %v427 = vmax.f32 %v423, 0.0
        %vm428 = vcmask 130048
        %429 = vst.msk [vmem:[%s222] sm:$0xff] %vm428, %v424
        %430 = vst.msk [vmem:[%s222 + $0x8] sm:$0xff] %vm428, %v425
        %431 = vst.msk [vmem:[%s222 + $0x10] sm:$0xff] %vm428, %v426
        %432 = vst.msk [vmem:[%s222 + $0x18] sm:$0xff] %vm428, %v427
        %s433 = sand.u32 %s97, 1
        %s434 = scalar_lea.sflag [#allocation4], %s433
        %s435 = sand.u32 %s97, 1
        %s436 = smul.addr %s435, 32
        %s437 = scalar_lea.vmem [#allocation8], %s436
        // Predicated region
        $region45: #{tpu_custom_call.1} parent=31 // pred_check
          %p438 = pneg %p107
        $region46: #{tpu_custom_call.1} parent=31 // pred_check_branch
          %440 = sbr.rel (%p438) target = $region48
        $region47: #{tpu_custom_call.1} parent=31 // pred_region
          %s441 = smul.u32 2, %s21
          %443 = vsyncadd %s434, 0
          %s444 = smul.addr %s441, 2
          %s445 = smul.addr %s444, 8
          %s446 = scalar_lea.hbm %s3, %s445
          %s447 = sshll.u32 %s437, 4
          %s448 = int_to_ptr.vmem [resolvable:$true] %s447
          %s449 = sshll.u32 %s446, 4
          %s450 = int_to_ptr.hbm [resolvable:$true] %s449
          %455 = dma.vmem_to_hbm [thread:$0]  %s448, 512, %s450, %s434, 128, 128, 8
        $region48: #{tpu_custom_call.1} parent=31 // pred_fallthru
          _
      $region32: #{tpu_custom_call.1} parent=5 // pred_fallthru
        _
      %p456 = scmp.le.s32.totalorder 2, %s16
      // Predicated region
      $region49: #{tpu_custom_call.1} parent=5 // pred_check
        %p457 = pneg %p456
      $region50: #{tpu_custom_call.1} parent=5 // pred_check_branch
        %459 = sbr.rel (%p457) target = $region52
      $region51: #{tpu_custom_call.1} parent=5 // pred_region
        %s460 = ssub.s32 %s16, 2
        // Predicated region
        $region53: #{tpu_custom_call.1} parent=51 // pred_check
          %p461 = pneg %p113
        $region54: #{tpu_custom_call.1} parent=51 // pred_check_branch
          %463 = sbr.rel (%p461) target = $region56
        $region55: #{tpu_custom_call.1} parent=51 // pred_region
          %s464 = sand.u32 %s98, 1
          %s465 = scalar_lea.sflag [#allocation4], %s464
          %s466 = sand.u32 %s98, 1
          %s467 = smul.addr %s466, 32
          %s468 = scalar_lea.vmem [#allocation8], %s467
          %470 = dma.done %s465, 512
        $region56: #{tpu_custom_call.1} parent=51 // pred_fallthru
          _
      $region52: #{tpu_custom_call.1} parent=5 // pred_fallthru
        _
    $region6: #{tpu_custom_call.1} parent=1 // loop_footer
      %s20 = sadd.s32 1, %s16
    $region7: #{tpu_custom_call.1} parent=1 // loop_footer_branch
      %15 = sbr.rel target = $region3
    $region8: #{tpu_custom_call.1} parent=1 // loop_exit
      _
    %471 = vsyncpa [#allocation3], 1
    %s472 = scalar_lea.sflag [#allocation3], 1
    %473 = vsyncpa %s472, 1
    %474 = vsyncpa [#allocation6], 1
    %475 = vsyncpa [#allocation4], 1
    %s476 = scalar_lea.sflag [#allocation4], 1
    %477 = vsyncpa %s476, 1

</llo_original>
